<compile_context>
chip_gen: v6e
topology: v6e:2x2x1
jax: 0.10.0
libtpu: 0.0.40
codegen_flags: <defaults>
</compile_context>

<pallas_src>
import jax
import jax.numpy as jnp
from jax import lax
from jax.experimental import pallas as pl
from jax.experimental.pallas import tpu as pltpu

# ImageNet normalization constants (from the module's __init__).
_MEAN = (0.485, 0.456, 0.406)
_STD = (0.229, 0.224, 0.225)
# Fused compile-time constants:  x*(1/(255*std)) + (-mean/std) == ((x/255)-mean)/std
_SCALE = tuple(1.0 / (255.0 * s) for s in _STD)
_BIAS = tuple(-m / s for m, s in zip(_MEAN, _STD))

_MAX_LANES = 8192  # lane tile cap: 3*8192*4 B = 96 KiB per buffer (f32)


def _normalize_kernel(x_ref, o_ref):
    # x_ref / o_ref: (1, 3, T) tiles.
    # Cast inside the kernel: uint8 inputs stay 1 B/elem over the HBM read.
    x = x_ref[...].astype(jnp.float32)
    # Per-channel scale/bias built from *scalar* Python constants (no captured
    # array constants, no DMA).  Channel axis is axis 1 of the (1, 3, T) tile.
    ch = lax.broadcasted_iota(jnp.int32, x.shape, 1)
    scale = jnp.where(ch == 0, _SCALE[0], jnp.where(ch == 1, _SCALE[1], _SCALE[2]))
    bias = jnp.where(ch == 0, _BIAS[0], jnp.where(ch == 1, _BIAS[1], _BIAS[2]))
    o_ref[...] = x * scale + bias


def _round_up(v: int, m: int) -> int:
    return ((v + m - 1) // m) * m


def _pick_tile(hw_padded: int, max_lanes: int = _MAX_LANES) -> int:
    """Largest multiple-of-128 lane tile <= max_lanes that divides hw_padded."""
    n128 = hw_padded // 128
    for k in range(min(max_lanes // 128, n128), 0, -1):
        if n128 % k == 0:
            return 128 * k
    return 128


def normalize(x: jax.Array) -> jax.Array:
    """Equivalent of Normalize.forward(x): ((x/255) - mean) / std, NCHW f32 out."""
    n, c, h, w = x.shape
    assert c == 3, "Normalize expects 3 channels (RGB)"
    hw = h * w
    x_flat = x.reshape(n, c, hw)

    # Pad the lane axis to a multiple of 128 only if needed (ragged tail).
    hw_p = _round_up(hw, 128)
    if hw_p != hw:
        x_flat = jnp.pad(x_flat, ((0, 0), (0, 0), (0, hw_p - hw)))

    tile = _pick_tile(hw_p)
    grid = (n, hw_p // tile)

    out_flat = pl.pallas_call(
        _normalize_kernel,
        out_shape=jax.ShapeDtypeStruct((n, c, hw_p), jnp.float32),
        grid_spec=pltpu.PrefetchScalarGridSpec(
            num_scalar_prefetch=0,
            grid=grid,
            in_specs=[pl.BlockSpec((1, c, tile), lambda i, j: (i, 0, j))],
            out_specs=pl.BlockSpec((1, c, tile), lambda i, j: (i, 0, j)),
        ),
        compiler_params=pltpu.CompilerParams(
            dimension_semantics=("parallel", "parallel"),
        ),
    )(x_flat)

    if hw_p != hw:
        out_flat = out_flat[:, :, :hw]
    return out_flat.reshape(n, c, h, w)
    # TODO(synk): for max end-to-end perf, fuse this elementwise pass into the
    # first consumer (e.g. patch-embed / first conv) to drop one HBM round trip.


if __name__ == "__main__":
    key = jax.random.PRNGKey(0)
    # Pixel-valued input in [0, 255], NCHW, 3 channels, 16x16 spatial.
    x = jax.random.uniform(key, (2, 3, 16, 16), dtype=jnp.float32) * 255.0

    out = jax.block_until_ready(normalize(x))

    # Reference check in plain JAX.
    mean = jnp.asarray(_MEAN, jnp.float32).reshape(1, 3, 1, 1)
    std = jnp.asarray(_STD, jnp.float32).reshape(1, 3, 1, 1)
    ref = (x / 255.0 - mean) / std
    assert out.shape == x.shape
    assert out.dtype == jnp.float32
    assert jnp.allclose(out, ref, atol=1e-5, rtol=1e-5)

    # Also exercise the uint8 fast path (1 byte/elem over the HBM read).
    x_u8 = (jax.random.uniform(jax.random.PRNGKey(1), (2, 3, 16, 16)) * 255.0).astype(jnp.uint8)
    out_u8 = jax.block_until_ready(normalize(x_u8))
    ref_u8 = (x_u8.astype(jnp.float32) / 255.0 - mean) / std
    assert jnp.allclose(out_u8, ref_u8, atol=1e-5, rtol=1e-5)

    print("KERNEL_OK")
</pallas_src>

<mosaic_0001>
module attributes {stable_mosaic.version = 11 : i64} {
  func.func @_normalize_kernel(%arg0: i32, %arg1: i32, %arg2: memref<1x3x256xf32, #tpu.memory_space<vmem>>, %arg3: memref<1x3x256xf32, #tpu.memory_space<vmem>>) attributes {dimension_semantics = [#tpu.dimension_semantics<parallel>, #tpu.dimension_semantics<parallel>], iteration_bounds = array<i64: 2, 1>, scalar_prefetch = 0 : i64, scratch_operands = 0 : i64, tpu.core_type = #tpu.core_type<tc>, window_params = [{transform_indices = @transform_0, window_bounds = array<i64: 1, 3, 256>}, {transform_indices = @transform_1, window_bounds = array<i64: 1, 3, 256>}]} {
    %c0 = arith.constant 0 : index
    %c0_0 = arith.constant 0 : index
    %c0_1 = arith.constant 0 : index
    %0 = vector.load %arg2[%c0, %c0_0, %c0_1] : memref<1x3x256xf32, #tpu.memory_space<vmem>>, vector<1x3x256xf32>
    %1 = tpu.iota {dimensions = array<i32: 1>} : vector<1x3x256xi32>
    %c0_i32 = arith.constant 0 : i32
    %2 = vector.broadcast %c0_i32 : i32 to vector<1x3x256xi32>
    %3 = arith.cmpi eq, %1, %2 : vector<1x3x256xi32>
    %c1_i32 = arith.constant 1 : i32
    %4 = vector.broadcast %c1_i32 : i32 to vector<1x3x256xi32>
    %5 = arith.cmpi eq, %1, %4 : vector<1x3x256xi32>
    %cst = arith.constant 0.0175070036 : f32
    %cst_2 = arith.constant 0.0174291935 : f32
    %6 = vector.broadcast %cst : f32 to vector<1x3x256xf32>
    %7 = vector.broadcast %cst_2 : f32 to vector<1x3x256xf32>
    %8 = arith.select %5, %6, %7 : vector<1x3x256xi1>, vector<1x3x256xf32>
    %cst_3 = arith.constant 0.0171247534 : f32
    %9 = vector.broadcast %cst_3 : f32 to vector<1x3x256xf32>
    %10 = arith.select %3, %9, %8 : vector<1x3x256xi1>, vector<1x3x256xf32>
    %c0_i32_4 = arith.constant 0 : i32
    %11 = vector.broadcast %c0_i32_4 : i32 to vector<1x3x256xi32>
    %12 = arith.cmpi eq, %1, %11 : vector<1x3x256xi32>
    %c1_i32_5 = arith.constant 1 : i32
    %13 = vector.broadcast %c1_i32_5 : i32 to vector<1x3x256xi32>
    %14 = arith.cmpi eq, %1, %13 : vector<1x3x256xi32>
    %cst_6 = arith.constant -2.03571439 : f32
    %cst_7 = arith.constant -1.80444443 : f32
    %15 = vector.broadcast %cst_6 : f32 to vector<1x3x256xf32>
    %16 = vector.broadcast %cst_7 : f32 to vector<1x3x256xf32>
    %17 = arith.select %14, %15, %16 : vector<1x3x256xi1>, vector<1x3x256xf32>
    %cst_8 = arith.constant -2.11790395 : f32
    %18 = vector.broadcast %cst_8 : f32 to vector<1x3x256xf32>
    %19 = arith.select %12, %18, %17 : vector<1x3x256xi1>, vector<1x3x256xf32>
    %20 = arith.mulf %0, %10 : vector<1x3x256xf32>
    %21 = arith.addf %20, %19 : vector<1x3x256xf32>
    %c0_9 = arith.constant 0 : index
    %c0_10 = arith.constant 0 : index
    %c0_11 = arith.constant 0 : index
    %22 = vector.load %arg3[%c0_9, %c0_10, %c0_11] : memref<1x3x256xf32, #tpu.memory_space<vmem>>, vector<1x3x256xf32>
    tpu.vector_store %arg3[%c0_9, %c0_10, %c0_11], %21 {strides = array<i32>} : memref<1x3x256xf32, #tpu.memory_space<vmem>>, vector<1x3x256xf32>,
    return
  }
  func.func @transform_0(%arg0: i32, %arg1: i32) -> (i32, i32, i32) {
    %c0_i32 = arith.constant 0 : i32
    %c0_i32_0 = arith.constant 0 : i32
    return %arg0, %c0_i32, %arg1 : i32, i32, i32
  }
  func.func @transform_1(%arg0: i32, %arg1: i32) -> (i32, i32, i32) {
    %c0_i32 = arith.constant 0 : i32
    %c0_i32_0 = arith.constant 0 : i32
    return %arg0, %c0_i32, %arg1 : i32, i32, i32
  }
}

</mosaic_0001>

<llo_original>
// kernel: tpu_custom_call.1
$region0: #{tpu_custom_call.1}
  #allocation0 [shape = 'u32[]', space=smem, size = 0x4, offset = 0x4, fixed_abs, tag = 'smem constant byte address 0x4 - core index']
  #allocation1 [shape = 'u32[144,128]{1,0:T(1,128)}', space=vmem, size = 0x12000, scoped, tag = 'internal scratch']
  %s0 = inlined_call_operand.vmem [shape: f32[2,3,256], index: 0, kind: input, shape index: {}]
  %s1 = inlined_call_operand.vmem [shape: f32[2,3,256], index: 1, kind: output, shape index: {}]
  %s2 = sld [smem:[#allocation0]]
  $region37: #{tpu_custom_call.1} parent=0
    _
  %s4 = ssub.s32 1, %s2
  %s5 = scalar_select 0, %s4, %s2
  loop: start=0, step=1, limit=4
  $region2: #{tpu_custom_call.1} parent=0 // loop_pre_header
    _
  $region3: #{tpu_custom_call.1} parent=0 // loop_header
    %s7 = sphi 0, %s11
    %p8 = scmp.ge.s32.totalorder %s7, 4
    %s14 = sphi 0, %s26
    %s15 = sphi 0, %s22
    %s16 = sphi 0, %s14
    %s17 = sphi 0, %s15
    %s18 = sphi 0, %s16
    %s19 = sphi 0, %s17
    %s31 = sphi 0, %s33
    %s34 = sphi 0, %s31
    %s35 = sphi 0, %s34
    %s51 = sphi 0, %s35
    %s59 = sphi 0, %s61
    %s62 = sphi 0, %s59
    %s63 = sphi 0, %s62
    %s79 = sphi 0, %s63
  $region4: #{tpu_custom_call.1} parent=0 // loop_header_branch
    %10 = sbr.rel (%p8) target = $region8
  $region5: #{tpu_custom_call.1} parent=0 // loop_body
    %s12 = ssub.s32 %s7, 1
    %s13 = ssub.s32 %s7, 2
    %s20 = sadd.s32 1, %s15
    %p21 = scmp.ge.s32.totalorder %s20, 1
    %s22 = scalar_select %p21, 0, %s20
    %s23 = sadd.s32 1, %s14
    %s24 = scalar_select %p21, %s23, %s14
    %p25 = scmp.ge.s32.totalorder %s24, 2
    %s26 = scalar_select %p25, 0, %s24
    %s27 = ssub.s32 %s14, %s26
    %s28 = ssub.s32 %s15, %s22
    %s29 = sor.u32 %s27, %s28
    %p30 = scmp.eq.s32.totalorder %s29, 0
    %s32 = sadd.s32 %s31, 1
    %s33 = scalar_select %p30, %s31, %s32
    %p36 = pneg %p30
    %p37 = scmp.eq.s32.totalorder %s7, 1
    %p38 = por %p36, %p37
    %p39 = scmp.ne.s32.totalorder %s31, %s34
    %p40 = scmp.eq.s32.totalorder %s7, 0
    %p41 = por %p39, %p40
    %p42 = scmp.ne.s32.totalorder %s31, %s34
    %p43 = scmp.eq.s32.totalorder %s12, 1
    %p44 = por %p42, %p43
    %p45 = scmp.ne.s32.totalorder %s34, %s35
    %p46 = scmp.eq.s32.totalorder %s12, 0
    %p47 = por %p45, %p46
    %p48 = scmp.ne.s32.totalorder %s34, %s35
    %p49 = scmp.eq.s32.totalorder %s13, 1
    %p50 = por %p48, %p49
    %p52 = scmp.ne.s32.totalorder %s35, %s51
    %p53 = scmp.eq.s32.totalorder %s13, 0
    %p54 = por %p52, %p53
    %s55 = ssub.s32 %s14, %s26
    %s56 = ssub.s32 %s15, %s22
    %s57 = sor.u32 %s55, %s56
    %p58 = scmp.eq.s32.totalorder %s57, 0
    %s60 = sadd.s32 %s59, 1
    %s61 = scalar_select %p58, %s59, %s60
    %p64 = pneg %p58
    %p65 = scmp.eq.s32.totalorder %s7, 1
    %p66 = por %p64, %p65
    %p67 = scmp.ne.s32.totalorder %s59, %s62
    %p68 = scmp.eq.s32.totalorder %s7, 0
    %p69 = por %p67, %p68
    %p70 = scmp.ne.s32.totalorder %s59, %s62
    %p71 = scmp.eq.s32.totalorder %s12, 1
    %p72 = por %p70, %p71
    %p73 = scmp.ne.s32.totalorder %s62, %s63
    %p74 = scmp.eq.s32.totalorder %s12, 0
    %p75 = por %p73, %p74
    %p76 = scmp.ne.s32.totalorder %s62, %s63
    %p77 = scmp.eq.s32.totalorder %s13, 1
    %p78 = por %p76, %p77
    %p80 = scmp.ne.s32.totalorder %s63, %s79
    %p81 = scmp.eq.s32.totalorder %s13, 0
    %p82 = por %p80, %p81
    %p83 = scmp.le.s32.totalorder 1, %s7
    %p84 = scmp.lt.s32.totalorder %s7, 3
    %p85 = pnand %p83, %p84
    %p86 = pneg %p85
    // Predicated region
    $region9: #{tpu_custom_call.1} parent=5 // pred_check
      _
    $region10: #{tpu_custom_call.1} parent=5 // pred_check_branch
      %88 = sbr.rel (%p85) target = $region12
    $region11: #{tpu_custom_call.1} parent=5 // pred_region
      %s89 = ssub.s32 %s7, 1
    $region12: #{tpu_custom_call.1} parent=5 // pred_fallthru
      _
    %p90 = scmp.lt.s32.totalorder %s7, 2
    // Predicated region
    $region13: #{tpu_custom_call.1} parent=5 // pred_check
      %p91 = pneg %p90
    $region14: #{tpu_custom_call.1} parent=5 // pred_check_branch
      %93 = sbr.rel (%p91) target = $region16
    $region15: #{tpu_custom_call.1} parent=5 // pred_region
      // Predicated region
      $region17: #{tpu_custom_call.1} parent=15 // pred_check
        %p94 = pneg %p41
      $region18: #{tpu_custom_call.1} parent=15 // pred_check_branch
        %96 = sbr.rel (%p94) target = $region20
      $region19: #{tpu_custom_call.1} parent=15 // pred_region
        %s97 = smul.u32 2, %s15
        %p98 = scmp.lt.s32.totalorder %s14, 1
        %s99 = scalar_select %p98, %s14, 1
        %p100 = scmp.lt.s32.totalorder %s97, 1
        %s101 = scalar_select %p100, %s97, 1
        %s102 = smul.addr %s99, 2
        %s103 = sadd.s32 %s101, %s102
        %s104 = smul.addr %s103, 4
        %s105 = scalar_lea.vmem %s0, %s104
        %s106 = smul.u32 2, %s15
      $region20: #{tpu_custom_call.1} parent=15 // pred_fallthru
        _
    $region16: #{tpu_custom_call.1} parent=5 // pred_fallthru
      _
    %p107 = scmp.le.s32.totalorder 1, %s7
    %p108 = scmp.lt.s32.totalorder %s7, 3
    %p109 = pnand %p107, %p108
    %p110 = pneg %p109
    // Predicated region
    $region21: #{tpu_custom_call.1} parent=5 // pred_check
      _
    $region22: #{tpu_custom_call.1} parent=5 // pred_check_branch
      %112 = sbr.rel (%p109) target = $region24
    $region23: #{tpu_custom_call.1} parent=5 // pred_region
      %s113 = ssub.s32 %s7, 1
      %s114 = smul.u32 2, %s17
      %p115 = scmp.lt.s32.totalorder %s16, 1
      %s116 = scalar_select %p115, %s16, 1
      %p117 = scmp.lt.s32.totalorder %s114, 1
      %s118 = scalar_select %p117, %s114, 1
      %s119 = smul.addr %s116, 2
      %s120 = sadd.s32 %s118, %s119
      %s121 = smul.addr %s120, 4
      %s122 = scalar_lea.vmem %s0, %s121
      %p123 = pneg %p47
      %p124 = pneg %p44
      %p125 = pneg %p75
      %p126 = pneg %p72
      %s127 = smul.u32 2, %s17
      %p128 = scmp.lt.s32.totalorder %s16, 1
      %s129 = scalar_select %p128, %s16, 1
      %p130 = scmp.lt.s32.totalorder %s127, 1
      %s131 = scalar_select %p130, %s127, 1
      %s132 = smul.addr %s129, 2
      %s133 = sadd.s32 %s131, %s132
      %s134 = smul.addr %s133, 4
      %s135 = scalar_lea.vmem %s1, %s134
      %s136 = smul.u32 2, %s17
      %p137 = scmp.lt.s32.totalorder %s16, 1
      %s138 = scalar_select %p137, %s16, 1
      %p139 = scmp.lt.s32.totalorder %s136, 1
      %s140 = scalar_select %p139, %s136, 1
      %s141 = smul.addr %s138, 2
      %s142 = sadd.s32 %s140, %s141
      %s143 = smul.addr %s142, 4
      %s144 = scalar_lea.vmem %s0, %s143
      %s145 = smul.u32 2, %s17
      %s146 = smul.u32 2, %s17
      %p147 = scmp.lt.s32.totalorder %s16, 1
      %s148 = scalar_select %p147, %s16, 1
      %p149 = scmp.lt.s32.totalorder %s146, 1
      %s150 = scalar_select %p149, %s146, 1
      %s151 = smul.addr %s148, 2
      %s152 = sadd.s32 %s150, %s151
      %s153 = smul.addr %s152, 4
      %s154 = scalar_lea.vmem %s1, %s153
      %s155 = smul.u32 2, %s17
      %v156 = vld [vmem:[%s144] sm:$0x77]
      %v157 = vlaneseq
      %v158 = vshrl.u32 %v157, 7
      %vm159 = vcmp.eq.s32.totalorder %v158, 0
      %vm160 = vcmp.eq.s32.totalorder %v158, 1
      %v161 = vsel %vm160, 0.017507004, 0.017429193
      %v162 = vsel %vm159, 0.017124753, %v161
      %v163 = vsel %vm160, -2.0357144, -1.8044444
      %v164 = vsel %vm159, -2.117904, %v163
      %v167 = vunpack.c.l.s4 839922192
      %v168 = vunpack.c.0.s8 %v167
      %v169 = vlaneseq
      %v170 = vshrl.u32 %v169, 7
      %v171 = vsub.s32 %v168, %v170
      %v172 = vrot.slane %v162, %v171
      %v174 = vmul.f32 %v156, %v172
      %v177 = vunpack.c.l.s4 839922192
      %v178 = vunpack.c.0.s8 %v177
      %v179 = vlaneseq
      %v180 = vshrl.u32 %v179, 7
      %v181 = vsub.s32 %v178, %v180
      %v182 = vrot.slane %v164, %v181
      %v184 = vadd.f32 %v174, %v182
      %185 = vst [vmem:[%s154] sm:$0x77] %v184
      %s186 = smul.u32 2, %s17
      %p187 = scmp.lt.s32.totalorder %s16, 1
      %s188 = scalar_select %p187, %s16, 1
      %p189 = scmp.lt.s32.totalorder %s186, 1
      %s190 = scalar_select %p189, %s186, 1
      %s191 = smul.addr %s188, 2
      %s192 = sadd.s32 %s190, %s191
      %s193 = smul.addr %s192, 4
      %s194 = scalar_lea.vmem %s1, %s193
      // Predicated region
      $region25: #{tpu_custom_call.1} parent=23 // pred_check
        %p195 = pneg %p72
      $region26: #{tpu_custom_call.1} parent=23 // pred_check_branch
        %197 = sbr.rel (%p195) target = $region28
      $region27: #{tpu_custom_call.1} parent=23 // pred_region
        %s198 = smul.u32 2, %s17
      $region28: #{tpu_custom_call.1} parent=23 // pred_fallthru
        _
    $region24: #{tpu_custom_call.1} parent=5 // pred_fallthru
      _
    %p199 = scmp.le.s32.totalorder 2, %s7
    // Predicated region
    $region29: #{tpu_custom_call.1} parent=5 // pred_check
      %p200 = pneg %p199
    $region30: #{tpu_custom_call.1} parent=5 // pred_check_branch
      %202 = sbr.rel (%p200) target = $region32
    $region31: #{tpu_custom_call.1} parent=5 // pred_region
      %s203 = ssub.s32 %s7, 2
      // Predicated region
      $region33: #{tpu_custom_call.1} parent=31 // pred_check
        %p204 = pneg %p78
      $region34: #{tpu_custom_call.1} parent=31 // pred_check_branch
        %206 = sbr.rel (%p204) target = $region36
      $region35: #{tpu_custom_call.1} parent=31 // pred_region
        %s207 = smul.u32 2, %s19
        %p208 = scmp.lt.s32.totalorder %s18, 1
        %s209 = scalar_select %p208, %s18, 1
        %p210 = scmp.lt.s32.totalorder %s207, 1
        %s211 = scalar_select %p210, %s207, 1
        %s212 = smul.addr %s209, 2
        %s213 = sadd.s32 %s211, %s212
        %s214 = smul.addr %s213, 4
        %s215 = scalar_lea.vmem %s1, %s214
      $region36: #{tpu_custom_call.1} parent=31 // pred_fallthru
        _
    $region32: #{tpu_custom_call.1} parent=5 // pred_fallthru
      _
  $region6: #{tpu_custom_call.1} parent=0 // loop_footer
    %s11 = sadd.s32 1, %s7
  $region7: #{tpu_custom_call.1} parent=0 // loop_footer_branch
    %6 = sbr.rel target = $region3
  $region8: #{tpu_custom_call.1} parent=0 // loop_exit
    _

</llo_original>
